<compile_context>
chip_gen: v7x
topology: tpu7x:2x2x1
jax: 0.10.0
libtpu: 0.0.40
codegen_flags: <defaults>
</compile_context>

<pallas_src>
import math
import jax
import jax.numpy as jnp
from jax import lax
from jax.experimental import pallas as pl
from jax.experimental.pallas import tpu as pltpu


def _pair(v):
    return v if isinstance(v, tuple) else (v, v)


def _round_up(x, m):
    return -(-x // m) * m


def _same_pads(ih, iw, kh, kw, sh, sw):
    # Exactly mirrors the PyTorch module's padding arithmetic.
    ph = max((ih - 1) // sh * sh + kh - ih, 0)
    pw = max((iw - 1) // sw * sw + kw - iw, 0)
    return ph // 2, ph - ph // 2, pw // 2, pw - pw // 2


# ----------------------------- Pallas kernel -------------------------------
def _matmul_kernel(p_ref, w_ref, o_ref):
    # One fused MXU dot per M-tile: (TILE_M, Kp) @ (Kp, OCp), f32 accumulation,
    # lane-dense bf16 store of the (TILE_M, OCp=128) result.
    o_ref[...] = jnp.dot(
        p_ref[...], w_ref[...], preferred_element_type=jnp.float32
    ).astype(o_ref.dtype)


# ------------------------- Conv2dSamePadding forward ------------------------
def conv2d_same_padding(x, weight, stride, *, compute_dtype=jnp.bfloat16,
                        lane_pad=128, tile_m_target=256):
    """x: (N, C, IH, IW) f32; weight: (OC, C, KH, KW) f32 -> (N, OC, OH, OW) f32.

    NOTE: operands are cast to bf16 (f32 MXU accumulation) - a documented
    fidelity change vs PyTorch's f32 Conv2d.
    """
    N, C, IH, IW = x.shape
    OC, Cw, KH, KW = weight.shape
    assert Cw == C  # TODO(synk): groups != 1 / dilation != 1 paths of nn.Conv2d not implemented.
    sh, sw = _pair(stride)

    pt, pb, plft, prgt = _same_pads(IH, IW, KH, KW, sh, sw)
    HP, WP = IH + pt + pb, IW + plft + prgt
    OH = (HP - KH) // sh + 1
    OW = (WP - KW) // sw + 1

    # ---- wrapper glue (fuses into one XLA program under jit) ---------------
    # NCHW -> NHWC, bf16, SAME pad.
    xp = jnp.pad(jnp.transpose(x, (0, 2, 3, 1)).astype(compute_dtype),
                 ((0, 0), (pt, pb), (plft, prgt), (0, 0)))

    # Lane-dense im2col: flatten (tap, C) into the lane dim so the whole contraction
    # K = KH*KW*C feeds a single MXU dot.  Tap order (kh outer, kw, c inner) matches
    # the weight reshape below.
    taps = [xp[:, kh:kh + sh * (OH - 1) + 1:sh, kw:kw + sw * (OW - 1) + 1:sw, :]
            for kh in range(KH) for kw in range(KW)]
    K = KH * KW * C
    patches = jnp.concatenate(taps, axis=-1).reshape(N * OH * OW, K)

    # Pad K/OC to lane multiples (unmasked 128-wide loads/stores) and fold batch
    # into the matmul M dim, tiled at <= tile_m_target rows per grid step.
    Kp = _round_up(K, lane_pad)
    OCp = _round_up(OC, lane_pad)
    M = N * OH * OW
    tile_m = min(tile_m_target, _round_up(M, 8))
    Mp = _round_up(M, tile_m)
    patches = jnp.pad(patches, ((0, Mp - M), (0, Kp - K)))

    # Weight (OC, C, KH, KW) -> (Kp, OCp); rows ordered (kh, kw, c) to match patches.
    w = jnp.transpose(weight, (2, 3, 1, 0)).reshape(K, OC)
    w = jnp.pad(w, ((0, Kp - K), (0, OCp - OC))).astype(compute_dtype)

    bytes_in = jnp.dtype(compute_dtype).itemsize
    cost = pl.CostEstimate(
        flops=2 * M * K * OC,
        transcendentals=0,
        bytes_accessed=(Mp * Kp + Kp * OCp + Mp * OCp) * bytes_in,
    )

    # Per-step VMEM (double-buffered): 2 * (tile_m*Kp + Kp*OCp + tile_m*OCp) * 2 B,
    # i.e. a few hundred KiB at tile_m=256 - far inside v7x's 64 MiB (32 MiB scoped).
    # TODO(synk): the weight block is grid-invariant; pipeline_mode=pl.Buffered(1)
    # (or a one-time DMA into scratch) would drop its second buffer when C/OC scale.
    out = pl.pallas_call(
        _matmul_kernel,
        out_shape=jax.ShapeDtypeStruct((Mp, OCp), compute_dtype),
        grid_spec=pltpu.PrefetchScalarGridSpec(
            num_scalar_prefetch=0,
            grid=(Mp // tile_m,),
            in_specs=[
                pl.BlockSpec((tile_m, Kp), lambda i: (i, 0)),
                pl.BlockSpec((Kp, OCp), lambda i: (0, 0)),
            ],
            out_specs=pl.BlockSpec((tile_m, OCp), lambda i: (i, 0)),
        ),
        compiler_params=pltpu.CompilerParams(
            dimension_semantics=("parallel",)),  # M tiles shard across v7x's 2 TCs
        cost_estimate=cost,
    )(patches, w)

    # Drop M/OC padding, cast back to f32, restore NCHW (module contract).
    out = out[:M, :OC].astype(jnp.float32).reshape(N, OH, OW, OC)
    return jnp.transpose(out, (0, 3, 1, 2))


# ---------------------------------- main ------------------------------------
if __name__ == "__main__":
    key = jax.random.PRNGKey(0)
    kx, kwt = jax.random.split(key)

    # Module config: in_channels=4, out_channels=8, kernel_size=3, stride=2, bias=False
    N, C, IH, IW = 2, 4, 16, 16
    OC, KH, KW = 8, 3, 3
    stride = (2, 2)

    x = jax.random.normal(kx, (N, C, IH, IW), dtype=jnp.float32)

    # Deterministic kaiming-uniform-like init (matches nn.Conv2d default bound).
    fan_in = C * KH * KW
    bound = 1.0 / math.sqrt(fan_in)
    weight = jax.random.uniform(kwt, (OC, C, KH, KW), minval=-bound, maxval=bound,
                                dtype=jnp.float32)

    fwd = jax.jit(lambda xx, ww: conv2d_same_padding(xx, ww, stride))
    out = jax.block_until_ready(fwd(x, weight))

    # Reference: XLA conv with identical explicit SAME padding; operands quantized
    # to bf16 exactly like the kernel (both sides accumulate in f32).
    pt, pb, plft, prgt = _same_pads(IH, IW, KH, KW, *stride)
    ref = lax.conv_general_dilated(
        x.astype(jnp.bfloat16).astype(jnp.float32),
        weight.astype(jnp.bfloat16).astype(jnp.float32),
        window_strides=stride,
        padding=((pt, pb), (plft, prgt)),
        dimension_numbers=("NCHW", "OIHW", "NCHW"),
        precision=lax.Precision.HIGHEST,
    )
    assert out.shape == ref.shape, (out.shape, ref.shape)
    assert jnp.allclose(out, ref, rtol=1e-2, atol=1e-2), "mismatch vs reference conv"

    print("KERNEL_OK")
</pallas_src>

<mosaic_0001>
module attributes {stable_mosaic.version = 11 : i64} {
  func.func @_matmul_kernel(%arg0: i32, %arg1: memref<128x128xbf16, #tpu.memory_space<vmem>>, %arg2: memref<128x128xbf16, #tpu.memory_space<vmem>>, %arg3: memref<128x128xbf16, #tpu.memory_space<vmem>>) attributes {dimension_semantics = [#tpu.dimension_semantics<parallel>], iteration_bounds = array<i64: 1>, scalar_prefetch = 0 : i64, scratch_operands = 0 : i64, tpu.core_type = #tpu.core_type<tc>, window_params = [{transform_indices = @transform_0, window_bounds = array<i64: 128, 128>}, {pipeline_mode = #tpu.pipeline_mode<synchronous>, transform_indices = @transform_1, window_bounds = array<i64: 128, 128>}, {transform_indices = @transform_2, window_bounds = array<i64: 128, 128>}]} {
    %c0 = arith.constant 0 : index
    %c0_0 = arith.constant 0 : index
    %0 = vector.load %arg1[%c0, %c0_0] : memref<128x128xbf16, #tpu.memory_space<vmem>>, vector<128x128xbf16>
    %c0_1 = arith.constant 0 : index
    %c0_2 = arith.constant 0 : index
    %1 = vector.load %arg2[%c0_1, %c0_2] : memref<128x128xbf16, #tpu.memory_space<vmem>>, vector<128x128xbf16>
    %cst = arith.constant dense<0.000000e+00> : vector<128x128xf32>
    %2 = tpu.matmul %0, %1, %cst {dimension_numbers = #tpu.dot_dimension_numbers<[1], [0], [0], [1], [0, 0, 1, 1], [], []>} : vector<128x128xbf16>, vector<128x128xbf16>, vector<128x128xf32> -> vector<128x128xf32>
    %3 = arith.truncf %2 : vector<128x128xf32> to vector<128x128xbf16>
    %c0_3 = arith.constant 0 : index
    %c0_4 = arith.constant 0 : index
    %4 = vector.load %arg3[%c0_3, %c0_4] : memref<128x128xbf16, #tpu.memory_space<vmem>>, vector<128x128xbf16>
    tpu.vector_store %arg3[%c0_3, %c0_4], %3 {strides = array<i32>} : memref<128x128xbf16, #tpu.memory_space<vmem>>, vector<128x128xbf16>,
    return
  }
  func.func @transform_0(%arg0: i32) -> (i32, i32) {
    %c0_i32 = arith.constant 0 : i32
    %c0_i32_0 = arith.constant 0 : i32
    return %arg0, %c0_i32 : i32, i32
  }
  func.func @transform_1(%arg0: i32) -> (i32, i32) {
    %c0_i32 = arith.constant 0 : i32
    %c0_i32_0 = arith.constant 0 : i32
    %c0_i32_1 = arith.constant 0 : i32
    return %c0_i32, %c0_i32_0 : i32, i32
  }
  func.func @transform_2(%arg0: i32) -> (i32, i32) {
    %c0_i32 = arith.constant 0 : i32
    %c0_i32_0 = arith.constant 0 : i32
    return %arg0, %c0_i32 : i32, i32
  }
}

</mosaic_0001>

<llo_original>
// kernel: _lambda_.1
$region0: #{_lambda_.1}
  #allocation0 [shape = 'u32[]', space=smem, size = 0x4, offset = 0x4, fixed_abs, tag = 'smem constant byte address 0x4 - core index']
  #allocation1 [shape = 'u32[144,128]{1,0:T(1,128)}', space=vmem, size = 0x12000, scoped, tag = 'internal scratch']
  %s0 = inlined_call_operand.vmem [shape: bf16[128,128], index: 0, kind: input, shape index: {}]
  %s1 = inlined_call_operand.vmem [shape: bf16[128,128], index: 1, kind: input, shape index: {}]
  %s2 = inlined_call_operand.vmem [shape: bf16[128,128], index: 2, kind: output, shape index: {}]
  %s3 = sld [smem:[#allocation0]]
  $region18: #{_lambda_.1} parent=0
    _
  %s5 = ssub.s32 1, %s3
  %s6 = scalar_select 0, %s5, %s3
  // Predicated region
  $region2: #{_lambda_.1} parent=0 // pred_check
    _
  $region3: #{_lambda_.1} parent=0 // pred_check_branch
    %8 = sbr.rel (0) target = $region5
  $region4: #{_lambda_.1} parent=0 // pred_region
    _
  $region5: #{_lambda_.1} parent=0 // pred_fallthru
    _
  // Predicated region
  $region6: #{_lambda_.1} parent=0 // pred_check
    _
  $region7: #{_lambda_.1} parent=0 // pred_check_branch
    %10 = sbr.rel (0) target = $region9
  $region8: #{_lambda_.1} parent=0 // pred_region
    _
  $region9: #{_lambda_.1} parent=0 // pred_fallthru
    _
  %v12 = vld [vmem:[%s0] sm:$0xf]
  %v13 = vld [vmem:[%s0 + $0x4] sm:$0xf]
  %v14 = vld [vmem:[%s0 + $0x8] sm:$0xf]
  %v15 = vld [vmem:[%s0 + $0xc] sm:$0xf]
  %v16 = vld [vmem:[%s0 + $0x10] sm:$0xf]
  %v17 = vld [vmem:[%s0 + $0x14] sm:$0xf]
  %v18 = vld [vmem:[%s0 + $0x18] sm:$0xf]
  %v19 = vld [vmem:[%s0 + $0x1c] sm:$0xf]
  %v20 = vld [vmem:[%s0 + $0x20] sm:$0xf]
  %v21 = vld [vmem:[%s0 + $0x24] sm:$0xf]
  %v22 = vld [vmem:[%s0 + $0x28] sm:$0xf]
  %v23 = vld [vmem:[%s0 + $0x2c] sm:$0xf]
  %v24 = vld [vmem:[%s0 + $0x30] sm:$0xf]
  %v25 = vld [vmem:[%s0 + $0x34] sm:$0xf]
  %v26 = vld [vmem:[%s0 + $0x38] sm:$0xf]
  %v27 = vld [vmem:[%s0 + $0x3c] sm:$0xf]
  %v28 = vld [vmem:[%s1] sm:$0xf]
  %v29 = vld [vmem:[%s1 + $0x4] sm:$0xf]
  %v30 = vld [vmem:[%s1 + $0x8] sm:$0xf]
  %v31 = vld [vmem:[%s1 + $0xc] sm:$0xf]
  %v32 = vld [vmem:[%s1 + $0x10] sm:$0xf]
  %v33 = vld [vmem:[%s1 + $0x14] sm:$0xf]
  %v34 = vld [vmem:[%s1 + $0x18] sm:$0xf]
  %v35 = vld [vmem:[%s1 + $0x1c] sm:$0xf]
  %v36 = vld [vmem:[%s1 + $0x20] sm:$0xf]
  %v37 = vld [vmem:[%s1 + $0x24] sm:$0xf]
  %v38 = vld [vmem:[%s1 + $0x28] sm:$0xf]
  %v39 = vld [vmem:[%s1 + $0x2c] sm:$0xf]
  %v40 = vld [vmem:[%s1 + $0x30] sm:$0xf]
  %v41 = vld [vmem:[%s1 + $0x34] sm:$0xf]
  %v42 = vld [vmem:[%s1 + $0x38] sm:$0xf]
  %v43 = vld [vmem:[%s1 + $0x3c] sm:$0xf]
  %v60 = vunpack.c.l.b16 %v12
  %v61 = vunpack.c.l.b16 %v13
  %v62 = vunpack.c.l.b16 %v14
  %v63 = vunpack.c.l.b16 %v15
  %v64 = vunpack.c.l.b16 %v16
  %v65 = vunpack.c.l.b16 %v17
  %v66 = vunpack.c.l.b16 %v18
  %v67 = vunpack.c.l.b16 %v19
  %v68 = vunpack.c.l.b16 %v20
  %v69 = vunpack.c.l.b16 %v21
  %v70 = vunpack.c.l.b16 %v22
  %v71 = vunpack.c.l.b16 %v23
  %v72 = vunpack.c.l.b16 %v24
  %v73 = vunpack.c.l.b16 %v25
  %v74 = vunpack.c.l.b16 %v26
  %v75 = vunpack.c.l.b16 %v27
  %v76 = vpack.c.b16 %v61, %v60
  %v77 = vpack.c.b16 %v63, %v62
  %v78 = vpack.c.b16 %v65, %v64
  %v79 = vpack.c.b16 %v67, %v66
  %v80 = vpack.c.b16 %v69, %v68
  %v81 = vpack.c.b16 %v71, %v70
  %v82 = vpack.c.b16 %v73, %v72
  %v83 = vpack.c.b16 %v75, %v74
  %v108 = vunpack.c.l.b16 %v28
  %v109 = vunpack.c.l.b16 %v29
  %v110 = vunpack.c.l.b16 %v30
  %v111 = vunpack.c.l.b16 %v31
  %v112 = vunpack.c.l.b16 %v32
  %v113 = vunpack.c.l.b16 %v33
  %v114 = vunpack.c.l.b16 %v34
  %v115 = vunpack.c.l.b16 %v35
  %v116 = vunpack.c.l.b16 %v36
  %v117 = vunpack.c.l.b16 %v37
  %v118 = vunpack.c.l.b16 %v38
  %v119 = vunpack.c.l.b16 %v39
  %v120 = vunpack.c.l.b16 %v40
  %v121 = vunpack.c.l.b16 %v41
  %v122 = vunpack.c.l.b16 %v42
  %v123 = vunpack.c.l.b16 %v43
  %v124 = vpack.c.b16 %v109, %v108
  %v125 = vpack.c.b16 %v111, %v110
  %v126 = vpack.c.b16 %v113, %v112
  %v127 = vpack.c.b16 %v115, %v114
  %v128 = vpack.c.b16 %v117, %v116
  %v129 = vpack.c.b16 %v119, %v118
  %v130 = vpack.c.b16 %v121, %v120
  %v131 = vpack.c.b16 %v123, %v122
  %140 = vmatprep.subr.bf16.mxu0 0
  %141 = vmatpush1.bf16.msra.mxu0 %v124
  %142 = vmatprep.subr.bf16.mxu0 0
  %143 = vmatpush1.bf16.msra.mxu0 %v125
  %144 = vmatprep.subr.bf16.mxu0 0
  %145 = vmatpush1.bf16.msra.mxu0 %v126
  %146 = vmatprep.subr.bf16.mxu0 0
  %147 = vmatpush1.bf16.msra.mxu0 %v127
  %148 = vmatprep.subr.bf16.mxu0 0
  %149 = vmatpush1.bf16.msra.mxu0 %v128
  %150 = vmatprep.subr.bf16.mxu0 0
  %151 = vmatpush1.bf16.msra.mxu0 %v129
  %152 = vmatprep.subr.bf16.mxu0 0
  %153 = vmatpush1.bf16.msra.mxu0 %v130
  %154 = vmatprep.subr.bf16.mxu0 0
  %155 = vmatpush1.bf16.msra.mxu0 %v131
  %156 = vmatprep.subr.bf16.mxu0 0
  %157 = vmatpush1.bf16.msra.mxu0 0
  %158 = vmatprep.subr.bf16.mxu0 0
  %159 = vmatpush1.bf16.msra.mxu0 0
  %160 = vmatprep.subr.bf16.mxu0 0
  %161 = vmatpush1.bf16.msra.mxu0 0
  %162 = vmatprep.subr.bf16.mxu0 0
  %163 = vmatpush1.bf16.msra.mxu0 0
  %164 = vmatprep.subr.bf16.mxu0 0
  %165 = vmatpush1.bf16.msra.mxu0 0
  %166 = vmatprep.subr.bf16.mxu0 0
  %167 = vmatpush1.bf16.msra.mxu0 0
  %168 = vmatprep.subr.bf16.mxu0 0
  %169 = vmatpush1.bf16.msra.mxu0 0
  %170 = vmatprep.subr.bf16.mxu0 0
  %171 = vmatpush1.bf16.msra.mxu0 0
  %172 = vmatprep.mubr.bf16.mxu0 0
  %173 = vmatmul.mubr.bf16.gmra.mrb[0].mxu0 %v76
  %v174 = vpop.f32.mrb[0].mxu0
  %v175 = vadd.f32 0.0, %v174
  %v176 = vpop.f32.mrb[0].mxu0
  %v177 = vpop.f32.mrb[0].mxu0
  %v178 = vadd.f32 0.0, %v177
  %v179 = vpop.f32.mrb[0].mxu0
  %180 = vmatprep.mubr.bf16.mxu0 0
  %181 = vmatmul.mubr.bf16.gmra.mrb[0].mxu0 %v77
  %v182 = vpop.f32.mrb[0].mxu0
  %v183 = vadd.f32 0.0, %v182
  %v184 = vpop.f32.mrb[0].mxu0
  %v185 = vpop.f32.mrb[0].mxu0
  %v186 = vadd.f32 0.0, %v185
  %v187 = vpop.f32.mrb[0].mxu0
  %188 = vmatprep.mubr.bf16.mxu0 0
  %189 = vmatmul.mubr.bf16.gmra.mrb[0].mxu0 %v78
  %v190 = vpop.f32.mrb[0].mxu0
  %v191 = vadd.f32 0.0, %v190
  %v192 = vpop.f32.mrb[0].mxu0
  %v193 = vpop.f32.mrb[0].mxu0
  %v194 = vadd.f32 0.0, %v193
  %v195 = vpop.f32.mrb[0].mxu0
  %196 = vmatprep.mubr.bf16.mxu0 0
  %197 = vmatmul.mubr.bf16.gmra.mrb[0].mxu0 %v79
  %v198 = vpop.f32.mrb[0].mxu0
  %v199 = vadd.f32 0.0, %v198
  %v200 = vpop.f32.mrb[0].mxu0
  %v201 = vpop.f32.mrb[0].mxu0
  %v202 = vadd.f32 0.0, %v201
  %v203 = vpop.f32.mrb[0].mxu0
  %204 = vmatprep.mubr.bf16.mxu0 0
  %205 = vmatmul.mubr.bf16.gmra.mrb[0].mxu0 %v80
  %v206 = vpop.f32.mrb[0].mxu0
  %v207 = vadd.f32 0.0, %v206
  %v208 = vpop.f32.mrb[0].mxu0
  %v209 = vpop.f32.mrb[0].mxu0
  %v210 = vadd.f32 0.0, %v209
  %v211 = vpop.f32.mrb[0].mxu0
  %212 = vmatprep.mubr.bf16.mxu0 0
  %213 = vmatmul.mubr.bf16.gmra.mrb[0].mxu0 %v81
  %v214 = vpop.f32.mrb[0].mxu0
  %v215 = vadd.f32 0.0, %v214
  %v216 = vpop.f32.mrb[0].mxu0
  %v217 = vpop.f32.mrb[0].mxu0
  %v218 = vadd.f32 0.0, %v217
  %v219 = vpop.f32.mrb[0].mxu0
  %220 = vmatprep.mubr.bf16.mxu0 0
  %221 = vmatmul.mubr.bf16.gmra.mrb[0].mxu0 %v82
  %v222 = vpop.f32.mrb[0].mxu0
  %v223 = vadd.f32 0.0, %v222
  %v224 = vpop.f32.mrb[0].mxu0
  %v225 = vpop.f32.mrb[0].mxu0
  %v226 = vadd.f32 0.0, %v225
  %v227 = vpop.f32.mrb[0].mxu0
  %228 = vmatprep.mubr.bf16.mxu0 0
  %229 = vmatmul.mubr.bf16.gmra.mrb[0].mxu0 %v83
  %v230 = vpop.f32.mrb[0].mxu0
  %v231 = vadd.f32 0.0, %v230
  %v232 = vpop.f32.mrb[0].mxu0
  %v233 = vpop.f32.mrb[0].mxu0
  %v234 = vadd.f32 0.0, %v233
  %v235 = vpop.f32.mrb[0].mxu0
  %236 = vdwg.mxu0
  %v237 = vpack.c.bf16 %v178, %v175
  %v238 = vpack.c.bf16 %v186, %v183
  %v239 = vpack.c.bf16 %v194, %v191
  %v240 = vpack.c.bf16 %v202, %v199
  %v241 = vpack.c.bf16 %v210, %v207
  %v242 = vpack.c.bf16 %v218, %v215
  %v243 = vpack.c.bf16 %v226, %v223
  %v244 = vpack.c.bf16 %v234, %v231
  %v253 = vunpack.c.l.b16 %v237
  %v254 = vunpack.c.h.b16 %v237
  %v255 = vunpack.c.l.b16 %v238
  %v256 = vunpack.c.h.b16 %v238
  %v257 = vunpack.c.l.b16 %v239
  %v258 = vunpack.c.h.b16 %v239
  %v259 = vunpack.c.l.b16 %v240
  %v260 = vunpack.c.h.b16 %v240
  %v261 = vunpack.c.l.b16 %v241
  %v262 = vunpack.c.h.b16 %v241
  %v263 = vunpack.c.l.b16 %v242
  %v264 = vunpack.c.h.b16 %v242
  %v265 = vunpack.c.l.b16 %v243
  %v266 = vunpack.c.h.b16 %v243
  %v267 = vunpack.c.l.b16 %v244
  %v268 = vunpack.c.h.b16 %v244
  %v269 = vpack.c.b16 %v253, %v253
  %v270 = vpack.c.b16 %v254, %v254
  %v271 = vpack.c.b16 %v255, %v255
  %v272 = vpack.c.b16 %v256, %v256
  %v273 = vpack.c.b16 %v257, %v257
  %v274 = vpack.c.b16 %v258, %v258
  %v275 = vpack.c.b16 %v259, %v259
  %v276 = vpack.c.b16 %v260, %v260
  %v277 = vpack.c.b16 %v261, %v261
  %v278 = vpack.c.b16 %v262, %v262
  %v279 = vpack.c.b16 %v263, %v263
  %v280 = vpack.c.b16 %v264, %v264
  %v281 = vpack.c.b16 %v265, %v265
  %v282 = vpack.c.b16 %v266, %v266
  %v283 = vpack.c.b16 %v267, %v267
  %v284 = vpack.c.b16 %v268, %v268
  %301 = vst [vmem:[%s2] sm:$0xf] %v269
  %302 = vst [vmem:[%s2 + $0x4] sm:$0xf] %v270
  %303 = vst [vmem:[%s2 + $0x8] sm:$0xf] %v271
  %304 = vst [vmem:[%s2 + $0xc] sm:$0xf] %v272
  %305 = vst [vmem:[%s2 + $0x10] sm:$0xf] %v273
  %306 = vst [vmem:[%s2 + $0x14] sm:$0xf] %v274
  %307 = vst [vmem:[%s2 + $0x18] sm:$0xf] %v275
  %308 = vst [vmem:[%s2 + $0x1c] sm:$0xf] %v276
  %309 = vst [vmem:[%s2 + $0x20] sm:$0xf] %v277
  %310 = vst [vmem:[%s2 + $0x24] sm:$0xf] %v278
  %311 = vst [vmem:[%s2 + $0x28] sm:$0xf] %v279
  %312 = vst [vmem:[%s2 + $0x2c] sm:$0xf] %v280
  %313 = vst [vmem:[%s2 + $0x30] sm:$0xf] %v281
  %314 = vst [vmem:[%s2 + $0x34] sm:$0xf] %v282
  %315 = vst [vmem:[%s2 + $0x38] sm:$0xf] %v283
  %316 = vst [vmem:[%s2 + $0x3c] sm:$0xf] %v284
  // Predicated region
  $region10: #{_lambda_.1} parent=0 // pred_check
    _
  $region11: #{_lambda_.1} parent=0 // pred_check_branch
    %318 = sbr.rel (0) target = $region13
  $region12: #{_lambda_.1} parent=0 // pred_region
    _
  $region13: #{_lambda_.1} parent=0 // pred_fallthru
    _
  // Predicated region
  $region14: #{_lambda_.1} parent=0 // pred_check
    _
  $region15: #{_lambda_.1} parent=0 // pred_check_branch
    %320 = sbr.rel (0) target = $region17
  $region16: #{_lambda_.1} parent=0 // pred_region
    _
  $region17: #{_lambda_.1} parent=0 // pred_fallthru
    _

</llo_original>
